<compile_context>
chip_gen: v7x
topology: tpu7x:2x2x1
jax: 0.10.0
libtpu: 0.0.40
codegen_flags: <defaults>
</compile_context>

<pallas_src>
import functools

import jax
import jax.numpy as jnp
from jax.experimental import pallas as pl
from jax.experimental.pallas import tpu as pltpu


def _round_up(x, m):
    return (x + m - 1) // m * m


def channel_att_kernel(x_ref, w1_ref, b1_ref, scale_ref, shift_ref,
                       w2_ref, b2_ref, o_ref, acc_ref, *, inv_hw):
    # x_ref: (TN, C, THW) tile of the (batch-tiled, spatially-tiled) input.
    j = pl.program_id(1)

    @pl.when(j == 0)
    def _():
        acc_ref[...] = jnp.zeros_like(acc_ref)

    # Partial spatial sum for this tile; upcast to f32 and accumulate in f32.
    xb = x_ref[...].astype(jnp.float32)          # (TN, C, THW)
    acc_ref[...] += jnp.sum(xb, axis=-1)         # (TN, C)

    @pl.when(j == pl.num_programs(1) - 1)
    def _():
        # mean = sum * 1/(H*W)  (inv_hw is a compile-time constant).
        pooled = acc_ref[...] * inv_hw                                   # (TN, C)

        # 1x1 conv #1 == dense: (TN, C) @ (C, Cr_pad) + b1
        h = jnp.dot(pooled, w1_ref[...],
                    preferred_element_type=jnp.float32) + b1_ref[...]    # (TN, Cr_pad)

        # BatchNorm2d (eval mode) folded into per-channel scale/shift, then ReLU.
        h = h * scale_ref[...] + shift_ref[...]
        h = jnp.maximum(h, 0.0)

        # 1x1 conv #2 == dense: (TN, Cr_pad) @ (Cr_pad, C) + b2
        y = jnp.dot(h, w2_ref[...],
                    preferred_element_type=jnp.float32) + b2_ref[...]    # (TN, C)

        o_ref[...] = jax.nn.sigmoid(y).astype(o_ref.dtype)


def channel_att(x, w1, b1, bn_scale, bn_shift, w2, b2, *, tn=8, thw=512):
    """x: (N, C, H, W) float32 or bfloat16. Returns (N, C, 1, 1) f32 attention map.

    tn  -- batch tile (must be a multiple of 8 or >= N); the batch grid axis is
           marked "parallel" so it shards across v7x's two TensorCores.
    thw -- spatial tile width (multiple of 128); reduction axis, "arbitrary".
    """
    N, C, H, W = x.shape
    HW = H * W
    Cr = w1.shape[1]

    # --- tile sizes / padding -------------------------------------------------
    tn = N if N < tn else tn
    n_pad = _round_up(N, tn)
    thw = min(thw, _round_up(HW, 128))
    hw_pad = _round_up(HW, thw)

    # Free reshape (no transpose): keep C on sublanes, H*W on lanes.
    x_flat = x.reshape(N, C, HW)
    if n_pad != N or hw_pad != HW:
        # Zero spatial padding contributes 0 to the sum; mean divides by the true HW.
        x_flat = jnp.pad(x_flat, ((0, n_pad - N), (0, 0), (0, hw_pad - HW)))

    # Pad the bottleneck dim Cr to a lane-dense multiple of 128 (zero rows of w2 make
    # the padded hidden units inert).
    cr_pad = _round_up(Cr, 128)
    if cr_pad != Cr:
        pc = cr_pad - Cr
        w1 = jnp.pad(w1, ((0, 0), (0, pc)))
        b1 = jnp.pad(b1, ((0, 0), (0, pc)))
        bn_scale = jnp.pad(bn_scale, ((0, 0), (0, pc)))
        bn_shift = jnp.pad(bn_shift, ((0, 0), (0, pc)))
        w2 = jnp.pad(w2, ((0, pc), (0, 0)))

    grid = (n_pad // tn, hw_pad // thw)
    inv_hw = float(1.0 / HW)

    itemsize = jnp.dtype(x_flat.dtype).itemsize
    cost = pl.CostEstimate(
        flops=n_pad * C * hw_pad              # pooling adds
        + 2 * n_pad * (C * cr_pad + cr_pad * C),
        transcendentals=n_pad * C,            # sigmoid
        bytes_accessed=x_flat.size * itemsize
        + (w1.size + w2.size + b1.size + b2.size + bn_scale.size + bn_shift.size) * 4
        + n_pad * C * 4,
    )

    kernel = functools.partial(channel_att_kernel, inv_hw=inv_hw)

    out = pl.pallas_call(
        kernel,
        out_shape=jax.ShapeDtypeStruct((n_pad, C), jnp.float32),
        grid_spec=pltpu.PrefetchScalarGridSpec(
            num_scalar_prefetch=0,
            grid=grid,
            in_specs=[
                pl.BlockSpec((tn, C, thw), lambda i, j: (i, 0, j)),   # x tile
                pl.BlockSpec((C, cr_pad), lambda i, j: (0, 0)),       # w1
                pl.BlockSpec((1, cr_pad), lambda i, j: (0, 0)),       # b1
                pl.BlockSpec((1, cr_pad), lambda i, j: (0, 0)),       # bn scale
                pl.BlockSpec((1, cr_pad), lambda i, j: (0, 0)),       # bn shift
                pl.BlockSpec((cr_pad, C), lambda i, j: (0, 0)),       # w2
                pl.BlockSpec((1, C), lambda i, j: (0, 0)),            # b2
            ],
            out_specs=pl.BlockSpec((tn, C), lambda i, j: (i, 0)),
            scratch_shapes=[pltpu.VMEM((tn, C), jnp.float32)],        # pooled-sum acc
        ),
        compiler_params=pltpu.CompilerParams(
            dimension_semantics=("parallel", "arbitrary")),
        cost_estimate=cost,
    )(x_flat, w1, b1, bn_scale, bn_shift, w2, b2)

    return out[:N].reshape(N, C, 1, 1)


def init_params(key, channel):
    """Deterministic synthetic init matching Channel_Att.__init__ shapes."""
    cr = channel // 4
    k1, k2, k3, k4, k5, k6 = jax.random.split(key, 6)
    # Conv2d(channel, channel//4, 1): weight (Cr, C, 1, 1) -> stored as (C, Cr) for x @ W
    w1 = jax.random.normal(k1, (channel, cr), jnp.float32) * 0.1
    b1 = jax.random.normal(k2, (1, cr), jnp.float32) * 0.1
    # BatchNorm2d(channel//4) in eval mode, folded to scale/shift.
    gamma = 1.0 + 0.1 * jax.random.normal(k3, (1, cr), jnp.float32)
    beta = 0.1 * jax.random.normal(k4, (1, cr), jnp.float32)
    running_mean = jnp.zeros((1, cr), jnp.float32)
    running_var = jnp.ones((1, cr), jnp.float32)
    eps = 1e-5
    bn_scale = gamma / jnp.sqrt(running_var + eps)
    bn_shift = beta - running_mean * bn_scale
    # Conv2d(channel//4, channel, 1): weight (C, Cr, 1, 1) -> stored as (Cr, C)
    w2 = jax.random.normal(k5, (cr, channel), jnp.float32) * 0.1
    b2 = jax.random.normal(k6, (1, channel), jnp.float32) * 0.1
    return w1, b1, bn_scale, bn_shift, w2, b2


def channel_att_ref(x, w1, b1, bn_scale, bn_shift, w2, b2):
    """Pure-JAX reference for correctness check (x expected in f32)."""
    pooled = jnp.mean(x, axis=(2, 3))                    # (N, C)
    h = pooled @ w1 + b1
    h = h * bn_scale + bn_shift
    h = jnp.maximum(h, 0.0)
    y = h @ w2 + b2
    return jax.nn.sigmoid(y)[:, :, None, None]           # (N, C, 1, 1)


if __name__ == "__main__":
    key = jax.random.PRNGKey(0)
    kx, kp = jax.random.split(key)

    # Small but non-trivial: exercises batch tiling + 2 spatial reduction steps.
    N, C, H, W = 4, 16, 32, 32          # channel divisible by 4 (C//4 = 4)
    x_f32 = jax.random.normal(kx, (N, C, H, W), jnp.float32)
    x = x_f32.astype(jnp.bfloat16)      # bf16 activations: halve HBM bytes read
    params = init_params(kp, C)

    out = channel_att(x, *params)
    out = jax.block_until_ready(out)

    # Reference uses the same bf16-quantized input so both sides see identical data.
    ref = channel_att_ref(x.astype(jnp.float32), *params)
    assert out.shape == (N, C, 1, 1)
    assert jnp.allclose(out, ref, atol=1e-4, rtol=1e-4), "mismatch vs reference"

    print("KERNEL_OK")
</pallas_src>

<mosaic_0001>
module attributes {stable_mosaic.version = 11 : i64} {
  func.func @channel_att_kernel(%arg0: i32, %arg1: i32, %arg2: memref<4x16x512xbf16, #tpu.memory_space<vmem>>, %arg3: memref<16x128xf32, #tpu.memory_space<vmem>>, %arg4: memref<1x128xf32, #tpu.memory_space<vmem>>, %arg5: memref<1x128xf32, #tpu.memory_space<vmem>>, %arg6: memref<1x128xf32, #tpu.memory_space<vmem>>, %arg7: memref<128x16xf32, #tpu.memory_space<vmem>>, %arg8: memref<1x16xf32, #tpu.memory_space<vmem>>, %arg9: memref<4x16xf32, #tpu.memory_space<vmem>>, %arg10: memref<4x16xf32, #tpu.memory_space<vmem>>) attributes {dimension_semantics = [#tpu.dimension_semantics<parallel>, #tpu.dimension_semantics<arbitrary>], iteration_bounds = array<i64: 1, 2>, scalar_prefetch = 0 : i64, scratch_operands = 1 : i64, tpu.core_type = #tpu.core_type<tc>, window_params = [{transform_indices = @transform_0, window_bounds = array<i64: 4, 16, 512>}, {pipeline_mode = #tpu.pipeline_mode<synchronous>, transform_indices = @transform_1, window_bounds = array<i64: 16, 128>}, {pipeline_mode = #tpu.pipeline_mode<synchronous>, transform_indices = @transform_2, window_bounds = array<i64: 1, 128>}, {pipeline_mode = #tpu.pipeline_mode<synchronous>, transform_indices = @transform_3, window_bounds = array<i64: 1, 128>}, {pipeline_mode = #tpu.pipeline_mode<synchronous>, transform_indices = @transform_4, window_bounds = array<i64: 1, 128>}, {pipeline_mode = #tpu.pipeline_mode<synchronous>, transform_indices = @transform_5, window_bounds = array<i64: 128, 16>}, {pipeline_mode = #tpu.pipeline_mode<synchronous>, transform_indices = @transform_6, window_bounds = array<i64: 1, 16>}, {transform_indices = @transform_7, window_bounds = array<i64: 4, 16>}]} {
    %c0_i32 = arith.constant 0 : i32
    %0 = arith.cmpi eq, %arg1, %c0_i32 : i32
    %1 = arith.extui %0 : i1 to i32
    %c0_i32_0 = arith.constant 0 : i32
    %2 = arith.cmpi ne, %1, %c0_i32_0 : i32
    scf.if %2 {
      %cst_8 = arith.constant 0.000000e+00 : f32
      %12 = vector.broadcast %cst_8 : f32 to vector<4x16xf32>
      %c0_9 = arith.constant 0 : index
      %c0_10 = arith.constant 0 : index
      %13 = vector.load %arg10[%c0_9, %c0_10] : memref<4x16xf32, #tpu.memory_space<vmem>>, vector<4x16xf32>
      tpu.vector_store %arg10[%c0_9, %c0_10], %12 {strides = array<i32>} : memref<4x16xf32, #tpu.memory_space<vmem>>, vector<4x16xf32>,
    } else {
    }
    %c0 = arith.constant 0 : index
    %c0_1 = arith.constant 0 : index
    %c0_2 = arith.constant 0 : index
    %3 = vector.load %arg2[%c0, %c0_1, %c0_2] : memref<4x16x512xbf16, #tpu.memory_space<vmem>>, vector<4x16x512xbf16>
    %4 = arith.extf %3 : vector<4x16x512xbf16> to vector<4x16x512xf32>
    %c0_3 = arith.constant 0 : index
    %c0_4 = arith.constant 0 : index
    %5 = vector.load %arg10[%c0_3, %c0_4] : memref<4x16xf32, #tpu.memory_space<vmem>>, vector<4x16xf32>
    %cst = arith.constant dense<0.000000e+00> : vector<4x16xf32>
    %6 = vector.multi_reduction <add>, %4, %cst [2] : vector<4x16x512xf32> to vector<4x16xf32>
    %7 = arith.addf %5, %6 : vector<4x16xf32>
    %c0_5 = arith.constant 0 : index
    %c0_6 = arith.constant 0 : index
    %8 = vector.load %arg10[%c0_5, %c0_6] : memref<4x16xf32, #tpu.memory_space<vmem>>, vector<4x16xf32>
    tpu.vector_store %arg10[%c0_5, %c0_6], %7 {strides = array<i32>} : memref<4x16xf32, #tpu.memory_space<vmem>>, vector<4x16xf32>,
    %c1_i32 = arith.constant 1 : i32
    %9 = arith.cmpi eq, %arg1, %c1_i32 : i32
    %10 = arith.extui %9 : i1 to i32
    %c0_i32_7 = arith.constant 0 : i32
    %11 = arith.cmpi ne, %10, %c0_i32_7 : i32
    scf.if %11 {
      %c0_8 = arith.constant 0 : index
      %c0_9 = arith.constant 0 : index
      %12 = vector.load %arg10[%c0_8, %c0_9] : memref<4x16xf32, #tpu.memory_space<vmem>>, vector<4x16xf32>
      %cst_10 = arith.constant 9.765625E-4 : f32
      %13 = vector.broadcast %cst_10 : f32 to vector<4x16xf32>
      %14 = arith.mulf %12, %13 : vector<4x16xf32>
      %c0_11 = arith.constant 0 : index
      %c0_12 = arith.constant 0 : index
      %15 = vector.load %arg3[%c0_11, %c0_12] : memref<16x128xf32, #tpu.memory_space<vmem>>, vector<16x128xf32>
      %cst_13 = arith.constant dense<0.000000e+00> : vector<4x128xf32>
      %16 = tpu.matmul %14, %15, %cst_13 {dimension_numbers = #tpu.dot_dimension_numbers<[1], [0], [0], [1], [0, 0, 1, 1], [], []>} : vector<4x16xf32>, vector<16x128xf32>, vector<4x128xf32> -> vector<4x128xf32>
      %c0_14 = arith.constant 0 : index
      %c0_15 = arith.constant 0 : index
      %17 = vector.load %arg4[%c0_14, %c0_15] : memref<1x128xf32, #tpu.memory_space<vmem>>, vector<1x128xf32>
      %18 = vector.broadcast %17 : vector<1x128xf32> to vector<4x128xf32>
      %19 = arith.addf %16, %18 : vector<4x128xf32>
      %c0_16 = arith.constant 0 : index
      %c0_17 = arith.constant 0 : index
      %20 = vector.load %arg5[%c0_16, %c0_17] : memref<1x128xf32, #tpu.memory_space<vmem>>, vector<1x128xf32>
      %21 = vector.broadcast %20 : vector<1x128xf32> to vector<4x128xf32>
      %22 = arith.mulf %19, %21 : vector<4x128xf32>
      %c0_18 = arith.constant 0 : index
      %c0_19 = arith.constant 0 : index
      %23 = vector.load %arg6[%c0_18, %c0_19] : memref<1x128xf32, #tpu.memory_space<vmem>>, vector<1x128xf32>
      %24 = vector.broadcast %23 : vector<1x128xf32> to vector<4x128xf32>
      %25 = arith.addf %22, %24 : vector<4x128xf32>
      %cst_20 = arith.constant 0.000000e+00 : f32
      %26 = vector.broadcast %cst_20 : f32 to vector<4x128xf32>
      %27 = arith.maximumf %25, %26 : vector<4x128xf32>
      %c0_21 = arith.constant 0 : index
      %c0_22 = arith.constant 0 : index
      %28 = vector.load %arg7[%c0_21, %c0_22] : memref<128x16xf32, #tpu.memory_space<vmem>>, vector<128x16xf32>
      %cst_23 = arith.constant dense<0.000000e+00> : vector<4x16xf32>
      %29 = tpu.matmul %27, %28, %cst_23 {dimension_numbers = #tpu.dot_dimension_numbers<[1], [0], [0], [1], [0, 0, 1, 1], [], []>} : vector<4x128xf32>, vector<128x16xf32>, vector<4x16xf32> -> vector<4x16xf32>
      %c0_24 = arith.constant 0 : index
      %c0_25 = arith.constant 0 : index
      %30 = vector.load %arg8[%c0_24, %c0_25] : memref<1x16xf32, #tpu.memory_space<vmem>>, vector<1x16xf32>
      %31 = vector.broadcast %30 : vector<1x16xf32> to vector<4x16xf32>
      %32 = arith.addf %29, %31 : vector<4x16xf32>
      %33 = arith.negf %32 : vector<4x16xf32>
      %34 = math.exp %33 : vector<4x16xf32>
      %cst_26 = arith.constant 1.000000e+00 : f32
      %35 = vector.broadcast %cst_26 : f32 to vector<4x16xf32>
      %36 = arith.addf %35, %34 : vector<4x16xf32>
      %37 = arith.divf %35, %36 : vector<4x16xf32>
      %c0_27 = arith.constant 0 : index
      %c0_28 = arith.constant 0 : index
      %38 = vector.load %arg9[%c0_27, %c0_28] : memref<4x16xf32, #tpu.memory_space<vmem>>, vector<4x16xf32>
      tpu.vector_store %arg9[%c0_27, %c0_28], %37 {strides = array<i32>} : memref<4x16xf32, #tpu.memory_space<vmem>>, vector<4x16xf32>,
    } else {
    }
    return
  }
  func.func @transform_0(%arg0: i32, %arg1: i32) -> (i32, i32, i32) {
    %c0_i32 = arith.constant 0 : i32
    %c0_i32_0 = arith.constant 0 : i32
    return %arg0, %c0_i32, %arg1 : i32, i32, i32
  }
  func.func @transform_1(%arg0: i32, %arg1: i32) -> (i32, i32) {
    %c0_i32 = arith.constant 0 : i32
    %c0_i32_0 = arith.constant 0 : i32
    %c0_i32_1 = arith.constant 0 : i32
    return %c0_i32, %c0_i32_0 : i32, i32
  }
  func.func @transform_2(%arg0: i32, %arg1: i32) -> (i32, i32) {
    %c0_i32 = arith.constant 0 : i32
    %c0_i32_0 = arith.constant 0 : i32
    %c0_i32_1 = arith.constant 0 : i32
    return %c0_i32, %c0_i32_0 : i32, i32
  }
  func.func @transform_3(%arg0: i32, %arg1: i32) -> (i32, i32) {
    %c0_i32 = arith.constant 0 : i32
    %c0_i32_0 = arith.constant 0 : i32
    %c0_i32_1 = arith.constant 0 : i32
    return %c0_i32, %c0_i32_0 : i32, i32
  }
  func.func @transform_4(%arg0: i32, %arg1: i32) -> (i32, i32) {
    %c0_i32 = arith.constant 0 : i32
    %c0_i32_0 = arith.constant 0 : i32
    %c0_i32_1 = arith.constant 0 : i32
    return %c0_i32, %c0_i32_0 : i32, i32
  }
  func.func @transform_5(%arg0: i32, %arg1: i32) -> (i32, i32) {
    %c0_i32 = arith.constant 0 : i32
    %c0_i32_0 = arith.constant 0 : i32
    %c0_i32_1 = arith.constant 0 : i32
    return %c0_i32, %c0_i32_0 : i32, i32
  }
  func.func @transform_6(%arg0: i32, %arg1: i32) -> (i32, i32) {
    %c0_i32 = arith.constant 0 : i32
    %c0_i32_0 = arith.constant 0 : i32
    %c0_i32_1 = arith.constant 0 : i32
    return %c0_i32, %c0_i32_0 : i32, i32
  }
  func.func @transform_7(%arg0: i32, %arg1: i32) -> (i32, i32) {
    %c0_i32 = arith.constant 0 : i32
    %c0_i32_0 = arith.constant 0 : i32
    return %arg0, %c0_i32 : i32, i32
  }
}

</mosaic_0001>

<llo_original>
// kernel: tpu_custom_call.1
$region0: #{tpu_custom_call.1}
  #allocation0 [shape = 'u32[]', space=smem, size = 0x4, offset = 0x4, fixed_abs, tag = 'smem constant byte address 0x4 - core index']
  #allocation1 [shape = 'u32[144,128]{1,0:T(1,128)}', space=vmem, size = 0x12000, scoped, tag = 'internal scratch']
  #allocation2 [shape = 'f32[4,16]{1,0:T(4,128)}', space=vmem, size = 0x800, scoped, tag = 'scratch operand']
  %s0 = inlined_call_operand.hbm [shape: bf16[4,16,1024], index: 0, kind: input, shape index: {}]
  %s1 = inlined_call_operand.vmem [shape: f32[16,128], index: 1, kind: input, shape index: {}]
  %s2 = inlined_call_operand.vmem [shape: f32[1,128], index: 2, kind: input, shape index: {}]
  %s3 = inlined_call_operand.vmem [shape: f32[1,128], index: 3, kind: input, shape index: {}]
  %s4 = inlined_call_operand.vmem [shape: f32[1,128], index: 4, kind: input, shape index: {}]
  %s5 = inlined_call_operand.vmem [shape: f32[128,16], index: 5, kind: input, shape index: {}]
  %s6 = inlined_call_operand.vmem [shape: f32[1,16], index: 6, kind: input, shape index: {}]
  %s7 = inlined_call_operand.hbm [shape: f32[4,16], index: 7, kind: output, shape index: {}]
  %s8 = sld [smem:[#allocation0]]
  $region73: #{tpu_custom_call.1} parent=0
    _
  %s10 = ssub.s32 1, %s8
  %s11 = scalar_select 0, %s10, %s8
  $region1: #{tpu_custom_call.1} parent=0
    #allocation3 [shape = 'u8[131072]{0}', space=vmem, size = 0x20000, scoped, tag = 'input window, operand 0']
    #allocation4 [shape = 's32[2]{0}', space=sflag, size = 0x8, scoped, tag = 'scoped memory for tpu_custom_call.1']
    #allocation5 [shape = 's32[2]{0}', space=sflag, size = 0x8, scoped, tag = 'scoped memory for tpu_custom_call.1']
    #allocation6 [shape = 'u8[2048]{0}', space=vmem, size = 0x800, scoped, tag = 'output window, operand 0, single buffered']
    %12 = vsyncpa [#allocation4], 0
    %s13 = scalar_lea.sflag [#allocation4], 1
    %14 = vsyncpa %s13, 0
    %15 = vsyncpa [#allocation5], 0
    loop: start=0, step=1, limit=4
    $region2: #{tpu_custom_call.1} parent=1 // loop_pre_header
      _
    $region3: #{tpu_custom_call.1} parent=1 // loop_header
      %s17 = sphi 0, %s21
      %p18 = scmp.ge.s32.totalorder %s17, 4
      %s24 = sphi 0, %s36
      %s25 = sphi 0, %s32
      %s26 = sphi 0, %s24
      %s27 = sphi 0, %s25
      %s28 = sphi 0, %s26
      %s29 = sphi 0, %s27
      %s41 = sphi 0, %s43
      %s44 = sphi 0, %s41
      %s45 = sphi 0, %s44
      %s61 = sphi 0, %s45
      %s65 = sphi 0, %s65
      %s67 = sphi 0, %s65
      %s68 = sphi 0, %s67
      %s82 = sphi 0, %s68
      %s86 = sphi 0, %s86
      %s88 = sphi 0, %s86
      %s89 = sphi 0, %s88
      %s103 = sphi 0, %s89
      %s107 = sphi 0, %s107
      %s109 = sphi 0, %s107
      %s110 = sphi 0, %s109
      %s124 = sphi 0, %s110
      %s128 = sphi 0, %s128
      %s130 = sphi 0, %s128
      %s131 = sphi 0, %s130
      %s145 = sphi 0, %s131
      %s149 = sphi 0, %s149
      %s151 = sphi 0, %s149
      %s152 = sphi 0, %s151
      %s166 = sphi 0, %s152
      %s170 = sphi 0, %s170
      %s172 = sphi 0, %s170
      %s173 = sphi 0, %s172
      %s187 = sphi 0, %s173
      %s193 = sphi 0, %s195
      %s196 = sphi 0, %s193
      %s197 = sphi 0, %s196
      %s213 = sphi 0, %s197
    $region4: #{tpu_custom_call.1} parent=1 // loop_header_branch
      %20 = sbr.rel (%p18) target = $region8
    $region5: #{tpu_custom_call.1} parent=1 // loop_body
      %s22 = ssub.s32 %s17, 1
      %s23 = ssub.s32 %s17, 2
      %s30 = sadd.s32 1, %s25
      %p31 = scmp.ge.s32.totalorder %s30, 2
      %s32 = scalar_select %p31, 0, %s30
      %s33 = sadd.s32 1, %s24
      %s34 = scalar_select %p31, %s33, %s24
      %p35 = scmp.ge.s32.totalorder %s34, 1
      %s36 = scalar_select %p35, 0, %s34
      %s37 = ssub.s32 %s24, %s36
      %s38 = ssub.s32 %s25, %s32
      %s39 = sor.u32 %s37, %s38
      %p40 = scmp.eq.s32.totalorder %s39, 0
      %s42 = sadd.s32 %s41, 1
      %s43 = scalar_select %p40, %s41, %s42
      %p46 = pneg %p40
      %p47 = scmp.eq.s32.totalorder %s17, 1
      %p48 = por %p46, %p47
      %p49 = scmp.ne.s32.totalorder %s41, %s44
      %p50 = scmp.eq.s32.totalorder %s17, 0
      %p51 = por %p49, %p50
      %p52 = scmp.ne.s32.totalorder %s41, %s44
      %p53 = scmp.eq.s32.totalorder %s22, 1
      %p54 = por %p52, %p53
      %p55 = scmp.ne.s32.totalorder %s44, %s45
      %p56 = scmp.eq.s32.totalorder %s22, 0
      %p57 = por %p55, %p56
      %p58 = scmp.ne.s32.totalorder %s44, %s45
      %p59 = scmp.eq.s32.totalorder %s23, 1
      %p60 = por %p58, %p59
      %p62 = scmp.ne.s32.totalorder %s45, %s61
      %p63 = scmp.eq.s32.totalorder %s23, 0
      %p64 = por %p62, %p63
      %s66 = sadd.s32 %s65, 1
      %p69 = scmp.eq.s32.totalorder %s17, 1
      %p70 = scmp.ne.s32.totalorder %s65, %s67
      %p71 = scmp.eq.s32.totalorder %s17, 0
      %p72 = por %p70, %p71
      %p73 = scmp.ne.s32.totalorder %s65, %s67
      %p74 = scmp.eq.s32.totalorder %s22, 1
      %p75 = por %p73, %p74
      %p76 = scmp.ne.s32.totalorder %s67, %s68
      %p77 = scmp.eq.s32.totalorder %s22, 0
      %p78 = por %p76, %p77
      %p79 = scmp.ne.s32.totalorder %s67, %s68
      %p80 = scmp.eq.s32.totalorder %s23, 1
      %p81 = por %p79, %p80
      %p83 = scmp.ne.s32.totalorder %s68, %s82
      %p84 = scmp.eq.s32.totalorder %s23, 0
      %p85 = por %p83, %p84
      %s87 = sadd.s32 %s86, 1
      %p90 = scmp.eq.s32.totalorder %s17, 1
      %p91 = scmp.ne.s32.totalorder %s86, %s88
      %p92 = scmp.eq.s32.totalorder %s17, 0
      %p93 = por %p91, %p92
      %p94 = scmp.ne.s32.totalorder %s86, %s88
      %p95 = scmp.eq.s32.totalorder %s22, 1
      %p96 = por %p94, %p95
      %p97 = scmp.ne.s32.totalorder %s88, %s89
      %p98 = scmp.eq.s32.totalorder %s22, 0
      %p99 = por %p97, %p98
      %p100 = scmp.ne.s32.totalorder %s88, %s89
      %p101 = scmp.eq.s32.totalorder %s23, 1
      %p102 = por %p100, %p101
      %p104 = scmp.ne.s32.totalorder %s89, %s103
      %p105 = scmp.eq.s32.totalorder %s23, 0
      %p106 = por %p104, %p105
      %s108 = sadd.s32 %s107, 1
      %p111 = scmp.eq.s32.totalorder %s17, 1
      %p112 = scmp.ne.s32.totalorder %s107, %s109
      %p113 = scmp.eq.s32.totalorder %s17, 0
      %p114 = por %p112, %p113
      %p115 = scmp.ne.s32.totalorder %s107, %s109
      %p116 = scmp.eq.s32.totalorder %s22, 1
      %p117 = por %p115, %p116
      %p118 = scmp.ne.s32.totalorder %s109, %s110
      %p119 = scmp.eq.s32.totalorder %s22, 0
      %p120 = por %p118, %p119
      %p121 = scmp.ne.s32.totalorder %s109, %s110
      %p122 = scmp.eq.s32.totalorder %s23, 1
      %p123 = por %p121, %p122
      %p125 = scmp.ne.s32.totalorder %s110, %s124
      %p126 = scmp.eq.s32.totalorder %s23, 0
      %p127 = por %p125, %p126
      %s129 = sadd.s32 %s128, 1
      %p132 = scmp.eq.s32.totalorder %s17, 1
      %p133 = scmp.ne.s32.totalorder %s128, %s130
      %p134 = scmp.eq.s32.totalorder %s17, 0
      %p135 = por %p133, %p134
      %p136 = scmp.ne.s32.totalorder %s128, %s130
      %p137 = scmp.eq.s32.totalorder %s22, 1
      %p138 = por %p136, %p137
      %p139 = scmp.ne.s32.totalorder %s130, %s131
      %p140 = scmp.eq.s32.totalorder %s22, 0
      %p141 = por %p139, %p140
      %p142 = scmp.ne.s32.totalorder %s130, %s131
      %p143 = scmp.eq.s32.totalorder %s23, 1
      %p144 = por %p142, %p143
      %p146 = scmp.ne.s32.totalorder %s131, %s145
      %p147 = scmp.eq.s32.totalorder %s23, 0
      %p148 = por %p146, %p147
      %s150 = sadd.s32 %s149, 1
      %p153 = scmp.eq.s32.totalorder %s17, 1
      %p154 = scmp.ne.s32.totalorder %s149, %s151
      %p155 = scmp.eq.s32.totalorder %s17, 0
      %p156 = por %p154, %p155
      %p157 = scmp.ne.s32.totalorder %s149, %s151
      %p158 = scmp.eq.s32.totalorder %s22, 1
      %p159 = por %p157, %p158
      %p160 = scmp.ne.s32.totalorder %s151, %s152
      %p161 = scmp.eq.s32.totalorder %s22, 0
      %p162 = por %p160, %p161
      %p163 = scmp.ne.s32.totalorder %s151, %s152
      %p164 = scmp.eq.s32.totalorder %s23, 1
      %p165 = por %p163, %p164
      %p167 = scmp.ne.s32.totalorder %s152, %s166
      %p168 = scmp.eq.s32.totalorder %s23, 0
      %p169 = por %p167, %p168
      %s171 = sadd.s32 %s170, 1
      %p174 = scmp.eq.s32.totalorder %s17, 1
      %p175 = scmp.ne.s32.totalorder %s170, %s172
      %p176 = scmp.eq.s32.totalorder %s17, 0
      %p177 = por %p175, %p176
      %p178 = scmp.ne.s32.totalorder %s170, %s172
      %p179 = scmp.eq.s32.totalorder %s22, 1
      %p180 = por %p178, %p179
      %p181 = scmp.ne.s32.totalorder %s172, %s173
      %p182 = scmp.eq.s32.totalorder %s22, 0
      %p183 = por %p181, %p182
      %p184 = scmp.ne.s32.totalorder %s172, %s173
      %p185 = scmp.eq.s32.totalorder %s23, 1
      %p186 = por %p184, %p185
      %p188 = scmp.ne.s32.totalorder %s173, %s187
      %p189 = scmp.eq.s32.totalorder %s23, 0
      %p190 = por %p188, %p189
      %s191 = ssub.s32 %s24, %s36
      %p192 = scmp.eq.s32.totalorder %s191, 0
      %s194 = sadd.s32 %s193, 1
      %s195 = scalar_select %p192, %s193, %s194
      %p198 = pneg %p192
      %p199 = scmp.eq.s32.totalorder %s17, 1
      %p200 = por %p198, %p199
      %p201 = scmp.ne.s32.totalorder %s193, %s196
      %p202 = scmp.eq.s32.totalorder %s17, 0
      %p203 = por %p201, %p202
      %p204 = scmp.ne.s32.totalorder %s193, %s196
      %p205 = scmp.eq.s32.totalorder %s22, 1
      %p206 = por %p204, %p205
      %p207 = scmp.ne.s32.totalorder %s196, %s197
      %p208 = scmp.eq.s32.totalorder %s22, 0
      %p209 = por %p207, %p208
      %p210 = scmp.ne.s32.totalorder %s196, %s197
      %p211 = scmp.eq.s32.totalorder %s23, 1
      %p212 = por %p210, %p211
      %p214 = scmp.ne.s32.totalorder %s197, %s213
      %p215 = scmp.eq.s32.totalorder %s23, 0
      %p216 = por %p214, %p215
      %p217 = scmp.le.s32.totalorder 1, %s17
      %p218 = scmp.lt.s32.totalorder %s17, 3
      %p219 = pnand %p217, %p218
      %p220 = pneg %p219
      // Predicated region
      $region9: #{tpu_custom_call.1} parent=5 // pred_check
        _
      $region10: #{tpu_custom_call.1} parent=5 // pred_check_branch
        %222 = sbr.rel (%p219) target = $region12
      $region11: #{tpu_custom_call.1} parent=5 // pred_region
        %s223 = ssub.s32 %s17, 1
        // Predicated region
        $region13: #{tpu_custom_call.1} parent=11 // pred_check
          %p224 = pneg %p78
        $region14: #{tpu_custom_call.1} parent=11 // pred_check_branch
          %226 = sbr.rel (%p224) target = $region16
        $region15: #{tpu_custom_call.1} parent=11 // pred_region
          _
        $region16: #{tpu_custom_call.1} parent=11 // pred_fallthru
          _
        // Predicated region
        $region17: #{tpu_custom_call.1} parent=11 // pred_check
          %p227 = pneg %p99
        $region18: #{tpu_custom_call.1} parent=11 // pred_check_branch
          %229 = sbr.rel (%p227) target = $region20
        $region19: #{tpu_custom_call.1} parent=11 // pred_region
          _
        $region20: #{tpu_custom_call.1} parent=11 // pred_fallthru
          _
        // Predicated region
        $region21: #{tpu_custom_call.1} parent=11 // pred_check
          %p230 = pneg %p120
        $region22: #{tpu_custom_call.1} parent=11 // pred_check_branch
          %232 = sbr.rel (%p230) target = $region24
        $region23: #{tpu_custom_call.1} parent=11 // pred_region
          _
        $region24: #{tpu_custom_call.1} parent=11 // pred_fallthru
          _
        // Predicated region
        $region25: #{tpu_custom_call.1} parent=11 // pred_check
          %p233 = pneg %p141
        $region26: #{tpu_custom_call.1} parent=11 // pred_check_branch
          %235 = sbr.rel (%p233) target = $region28
        $region27: #{tpu_custom_call.1} parent=11 // pred_region
          _
        $region28: #{tpu_custom_call.1} parent=11 // pred_fallthru
          _
        // Predicated region
        $region29: #{tpu_custom_call.1} parent=11 // pred_check
          %p236 = pneg %p162
        $region30: #{tpu_custom_call.1} parent=11 // pred_check_branch
          %238 = sbr.rel (%p236) target = $region32
        $region31: #{tpu_custom_call.1} parent=11 // pred_region
          _
        $region32: #{tpu_custom_call.1} parent=11 // pred_fallthru
          _
        // Predicated region
        $region33: #{tpu_custom_call.1} parent=11 // pred_check
          %p239 = pneg %p183
        $region34: #{tpu_custom_call.1} parent=11 // pred_check_branch
          %241 = sbr.rel (%p239) target = $region36
        $region35: #{tpu_custom_call.1} parent=11 // pred_region
          _
        $region36: #{tpu_custom_call.1} parent=11 // pred_fallthru
          _
      $region12: #{tpu_custom_call.1} parent=5 // pred_fallthru
        _
      %p242 = scmp.lt.s32.totalorder %s17, 2
      // Predicated region
      $region37: #{tpu_custom_call.1} parent=5 // pred_check
        %p243 = pneg %p242
      $region38: #{tpu_custom_call.1} parent=5 // pred_check_branch
        %245 = sbr.rel (%p243) target = $region40
      $region39: #{tpu_custom_call.1} parent=5 // pred_region
        // Predicated region
        $region41: #{tpu_custom_call.1} parent=39 // pred_check
          %p246 = pneg %p51
        $region42: #{tpu_custom_call.1} parent=39 // pred_check_branch
          %248 = sbr.rel (%p246) target = $region44
        $region43: #{tpu_custom_call.1} parent=39 // pred_region
          %s249 = sand.u32 %s41, 1
          %s250 = scalar_lea.sflag [#allocation4], %s249
          %s251 = sand.u32 %s41, 1
          %s252 = smul.addr %s251, 128
          %s253 = scalar_lea.vmem [#allocation3], %s252
          %s254 = smul.u32 4, %s24
          %s255 = smul.u32 4, %s25
          %s257 = ssub.s32 2048, 2048
          %258 = vsyncadd %s250, %s257
          %s259 = smul.addr %s254, 16
          %s260 = sadd.s32 %s255, %s259
          %s261 = smul.addr %s260, 64
          %s262 = scalar_lea.hbm %s0, %s261
          %s263 = sshll.u32 %s253, 4
          %s264 = int_to_ptr.vmem [resolvable:$true] %s263
          %269 = dma.hbm_to_vmem [thread:$0]  %s262, 2048, %s264, %s250, 512, 256, 16
        $region44: #{tpu_custom_call.1} parent=39 // pred_fallthru
          _
      $region40: #{tpu_custom_call.1} parent=5 // pred_fallthru
        _
      %p270 = scmp.le.s32.totalorder 1, %s17
      %p271 = scmp.lt.s32.totalorder %s17, 3
      %p272 = pnand %p270, %p271
      %p273 = pneg %p272
      // Predicated region
      $region45: #{tpu_custom_call.1} parent=5 // pred_check
        _
      $region46: #{tpu_custom_call.1} parent=5 // pred_check_branch
        %275 = sbr.rel (%p272) target = $region48
      $region47: #{tpu_custom_call.1} parent=5 // pred_region
        %s276 = ssub.s32 %s17, 1
        %s277 = sand.u32 %s44, 1
        %s278 = scalar_lea.sflag [#allocation4], %s277
        %s279 = sand.u32 %s44, 1
        %s280 = smul.addr %s279, 128
        %s281 = scalar_lea.vmem [#allocation3], %s280
        // Predicated region
        $region49: #{tpu_custom_call.1} parent=47 // pred_check
          %p282 = pneg %p57
        $region50: #{tpu_custom_call.1} parent=47 // pred_check_branch
          %284 = sbr.rel (%p282) target = $region52
        $region51: #{tpu_custom_call.1} parent=47 // pred_region
          %285 = dma.done %s278, 2048
        $region52: #{tpu_custom_call.1} parent=47 // pred_fallthru
          _
        %s286 = sand.u32 %s44, 1
        %s287 = scalar_lea.sflag [#allocation4], %s286
        %s288 = sand.u32 %s44, 1
        %s289 = smul.addr %s288, 128
        %s290 = scalar_lea.vmem [#allocation3], %s289
        %p291 = pneg %p57
        %p292 = pneg %p54
        %p293 = pneg %p78
        %p294 = pneg %p75
        %p295 = pneg %p99
        %p296 = pneg %p96
        %p297 = pneg %p120
        %p298 = pneg %p117
        %p299 = pneg %p141
        %p300 = pneg %p138
        %p301 = pneg %p162
        %p302 = pneg %p159
        %p303 = pneg %p183
        %p304 = pneg %p180
        %p305 = pneg %p209
        %p306 = pneg %p206
        %s307 = smul.u32 4, %s26
        %s308 = smul.u32 4, %s27
        %p309 = scmp.eq.s32.totalorder %s27, 0
        // Predicated region
        $region53: #{tpu_custom_call.1} parent=47 // pred_check
          %p310 = pneg %p309
        $region54: #{tpu_custom_call.1} parent=47 // pred_check_branch
          %312 = sbr.rel (%p310) target = $region56
        $region55: #{tpu_custom_call.1} parent=47 // pred_region
          %vm313 = vcmask 125952
          %314 = vst.msk [vmem:[#allocation2] sm:$0xf] %vm313, 0.0
        $region56: #{tpu_custom_call.1} parent=47 // pred_fallthru
          _
        %v315 = vld [vmem:[%s281] sm:$0xff]
        %v316 = vld [vmem:[%s281 + $0x8] sm:$0xff]
        %v317 = vld [vmem:[%s281 + $0x10] sm:$0xff]
        %v318 = vld [vmem:[%s281 + $0x18] sm:$0xff]
        %v319 = vld [vmem:[%s281 + $0x20] sm:$0xff]
        %v320 = vld [vmem:[%s281 + $0x28] sm:$0xff]
        %v321 = vld [vmem:[%s281 + $0x30] sm:$0xff]
        %v322 = vld [vmem:[%s281 + $0x38] sm:$0xff]
        %v323 = vld [vmem:[%s281 + $0x40] sm:$0xff]
        %v324 = vld [vmem:[%s281 + $0x48] sm:$0xff]
        %v325 = vld [vmem:[%s281 + $0x50] sm:$0xff]
        %v326 = vld [vmem:[%s281 + $0x58] sm:$0xff]
        %v327 = vld [vmem:[%s281 + $0x60] sm:$0xff]
        %v328 = vld [vmem:[%s281 + $0x68] sm:$0xff]
        %v329 = vld [vmem:[%s281 + $0x70] sm:$0xff]
        %v330 = vld [vmem:[%s281 + $0x78] sm:$0xff]
        %v331 = vunpack.c.l.bf16 %v315
        %v332 = vunpack.c.h.bf16 %v315
        %v333 = vunpack.c.l.bf16 %v316
        %v334 = vunpack.c.h.bf16 %v316
        %v335 = vunpack.c.l.bf16 %v317
        %v336 = vunpack.c.h.bf16 %v317
        %v337 = vunpack.c.l.bf16 %v318
        %v338 = vunpack.c.h.bf16 %v318
        %v339 = vunpack.c.l.bf16 %v319
        %v340 = vunpack.c.h.bf16 %v319
        %v341 = vunpack.c.l.bf16 %v320
        %v342 = vunpack.c.h.bf16 %v320
        %v343 = vunpack.c.l.bf16 %v321
        %v344 = vunpack.c.h.bf16 %v321
        %v345 = vunpack.c.l.bf16 %v322
        %v346 = vunpack.c.h.bf16 %v322
        %v347 = vunpack.c.l.bf16 %v323
        %v348 = vunpack.c.h.bf16 %v323
        %v349 = vunpack.c.l.bf16 %v324
        %v350 = vunpack.c.h.bf16 %v324
        %v351 = vunpack.c.l.bf16 %v325
        %v352 = vunpack.c.h.bf16 %v325
        %v353 = vunpack.c.l.bf16 %v326
        %v354 = vunpack.c.h.bf16 %v326
        %v355 = vunpack.c.l.bf16 %v327
        %v356 = vunpack.c.h.bf16 %v327
        %v357 = vunpack.c.l.bf16 %v328
        %v358 = vunpack.c.h.bf16 %v328
        %v359 = vunpack.c.l.bf16 %v329
        %v360 = vunpack.c.h.bf16 %v329
        %v361 = vunpack.c.l.bf16 %v330
        %v362 = vunpack.c.h.bf16 %v330
        %v363 = vld [vmem:[#allocation2] sm:$0xf]
        %v364 = vadd.f32 %v331, %v332
        %v365 = vadd.f32 %v364, %v333
        %v366 = vadd.f32 %v365, %v334
        %367 = vadd.xlane.f32.xlu0 %v366
        %v368 = vpop.xlane.xlu0 %367
        %v369 = vadd.f32 %v335, %v336
        %v370 = vadd.f32 %v369, %v337
        %v371 = vadd.f32 %v370, %v338
        %372 = vadd.xlane.f32.xlu0 %v371
        %v373 = vpop.xlane.xlu0 %372
        %v374 = vadd.f32 %v339, %v340
        %v375 = vadd.f32 %v374, %v341
        %v376 = vadd.f32 %v375, %v342
        %377 = vadd.xlane.f32.xlu0 %v376
        %v378 = vpop.xlane.xlu0 %377
        %v379 = vadd.f32 %v343, %v344
        %v380 = vadd.f32 %v379, %v345
        %v381 = vadd.f32 %v380, %v346
        %382 = vadd.xlane.f32.xlu0 %v381
        %v383 = vpop.xlane.xlu0 %382
        %v384 = vadd.f32 %v347, %v348
        %v385 = vadd.f32 %v384, %v349
        %v386 = vadd.f32 %v385, %v350
        %387 = vadd.xlane.f32.xlu0 %v386
        %v388 = vpop.xlane.xlu0 %387
        %v389 = vadd.f32 %v351, %v352
        %v390 = vadd.f32 %v389, %v353
        %v391 = vadd.f32 %v390, %v354
        %392 = vadd.xlane.f32.xlu0 %v391
        %v393 = vpop.xlane.xlu0 %392
        %v394 = vadd.f32 %v355, %v356
        %v395 = vadd.f32 %v394, %v357
        %v396 = vadd.f32 %v395, %v358
        %397 = vadd.xlane.f32.xlu0 %v396
        %v398 = vpop.xlane.xlu0 %397
        %v399 = vadd.f32 %v359, %v360
        %v400 = vadd.f32 %v399, %v361
        %v401 = vadd.f32 %v400, %v362
        %402 = vadd.xlane.f32.xlu0 %v401
        %v403 = vpop.xlane.xlu0 %402
        %v412 = vlaneseq
        %v413 = vand.u32 %v412, 127
        %v414 = vlaneseq
        %v415 = vshrl.u32 %v414, 7
        %v416 = vsub.s32 %v413, %v415
        %v417 = vrot.slane %v368, %v416
        %v418 = vadd.s32 %v413, 4294967288
        %v419 = vlaneseq
        %v420 = vshrl.u32 %v419, 7
        %v421 = vsub.s32 %v418, %v420
        %v422 = vrot.slane %v373, %v421
        %vm423 = vcmask 130112
        %v424 = vsel %vm423, %v422, %v417
        %v425 = vlaneseq
        %v426 = vshrl.u32 %v425, 7
        %v427 = vsub.s32 %v413, %v426
        %v428 = vrot.slane %v378, %v427
        %v429 = vlaneseq
        %v430 = vshrl.u32 %v429, 7
        %v431 = vsub.s32 %v418, %v430
        %v432 = vrot.slane %v383, %v431
        %v433 = vsel %vm423, %v432, %v428
        %v434 = vlaneseq
        %v435 = vshrl.u32 %v434, 7
        %v436 = vsub.s32 %v413, %v435
        %v437 = vrot.slane %v388, %v436
        %v438 = vlaneseq
        %v439 = vshrl.u32 %v438, 7
        %v440 = vsub.s32 %v418, %v439
        %v441 = vrot.slane %v393, %v440
        %v442 = vsel %vm423, %v441, %v437
        %v443 = vlaneseq
        %v444 = vshrl.u32 %v443, 7
        %v445 = vsub.s32 %v413, %v444
        %v446 = vrot.slane %v398, %v445
        %v447 = vlaneseq
        %v448 = vshrl.u32 %v447, 7
        %v449 = vsub.s32 %v418, %v448
        %v450 = vrot.slane %v403, %v449
        %v451 = vsel %vm423, %v450, %v446
        %vm452 = vcmask 1041409
        %v453 = vsel %vm452, %v433, %v424
        %vm454 = vcmask 1042434
        %v455 = vsel %vm454, %v442, %v453
        %vm456 = vcmask 1043459
        %v457 = vsel %vm456, %v451, %v455
        %v459 = vadd.f32 %v363, %v457
        %vm460 = vcmask 125952
        %461 = vst.msk [vmem:[#allocation2] sm:$0xf] %vm460, %v459
        %p462 = scmp.eq.s32.totalorder %s27, 1
        // Predicated region
        $region57: #{tpu_custom_call.1} parent=47 // pred_check
          %p463 = pneg %p462
        $region58: #{tpu_custom_call.1} parent=47 // pred_check_branch
          %465 = sbr.rel (%p463) target = $region60
        $region59: #{tpu_custom_call.1} parent=47 // pred_region
          %v466 = vld [vmem:[#allocation2] sm:$0xf]
          %v467 = vmul.f32 %v466, 0.0009765625
          %v468 = vld [vmem:[%s1] sm:$0xff]
          %v469 = vld [vmem:[%s1 + $0x8] sm:$0xff]
          %v470 = vld [vmem:[%s2] sm:$0x1]
          %v472 = vlaneseq
          %v473 = vshrl.u32 %v472, 7
          %v474 = vsub.s32 0, %v473
          %v475 = vrot.slane %v470, %v474
          %vm477 = vcmask 130048
          %v479 = vsel %vm477, %v467, 0
          %481 = vmatprep.subr.mxu0 0.0
          %482 = vmatpush1.msra.mxu0 %v468
          %483 = vmatprep.subr.mxu0 0.0
          %484 = vmatpush1.msra.mxu0 %v469
          %485 = vmatprep.subr.mxu0 0.0
          %486 = vmatpush1.msra.mxu0 0.0
          %487 = vmatprep.subr.mxu0 0.0
          %488 = vmatpush1.msra.mxu0 0.0
          %489 = vmatprep.subr.mxu0 0.0
          %490 = vmatpush1.msra.mxu0 0.0
          %491 = vmatprep.subr.mxu0 0.0
          %492 = vmatpush1.msra.mxu0 0.0
          %493 = vmatprep.subr.mxu0 0.0
          %494 = vmatpush1.msra.mxu0 0.0
          %495 = vmatprep.subr.mxu0 0.0
          %496 = vmatpush1.msra.mxu0 0.0
          %497 = vmatprep.subr.mxu0 0.0
          %498 = vmatpush1.msra.mxu0 0.0
          %499 = vmatprep.subr.mxu0 0.0
          %500 = vmatpush1.msra.mxu0 0.0
          %501 = vmatprep.subr.mxu0 0.0
          %502 = vmatpush1.msra.mxu0 0.0
          %503 = vmatprep.subr.mxu0 0.0
          %504 = vmatpush1.msra.mxu0 0.0
          %505 = vmatprep.subr.mxu0 0.0
          %506 = vmatpush1.msra.mxu0 0.0
          %507 = vmatprep.subr.mxu0 0.0
          %508 = vmatpush1.msra.mxu0 0.0
          %509 = vmatprep.subr.mxu0 0.0
          %510 = vmatpush1.msra.mxu0 0.0
          %511 = vmatprep.subr.mxu0 0.0
          %512 = vmatpush1.msra.mxu0 0.0
          %513 = vmatprep.subr.mxu0 0.0
          %514 = vmatpush1.msra.mxu0 0.0
          %515 = vmatprep.subr.mxu0 0.0
          %516 = vmatpush1.msra.mxu0 0.0
          %517 = vmatprep.subr.mxu0 0.0
          %518 = vmatpush1.msra.mxu0 0.0
          %519 = vmatprep.subr.mxu0 0.0
          %520 = vmatpush1.msra.mxu0 0.0
          %521 = vmatprep.subr.mxu0 0.0
          %522 = vmatpush1.msra.mxu0 0.0
          %523 = vmatprep.subr.mxu0 0.0
          %524 = vmatpush1.msra.mxu0 0.0
          %525 = vmatprep.subr.mxu0 0.0
          %526 = vmatpush1.msra.mxu0 0.0
          %527 = vmatprep.subr.mxu0 0.0
          %528 = vmatpush1.msra.mxu0 0.0
          %529 = vmatprep.subr.mxu0 0.0
          %530 = vmatpush1.msra.mxu0 0.0
          %531 = vmatprep.subr.mxu0 0.0
          %532 = vmatpush1.msra.mxu0 0.0
          %533 = vmatprep.subr.mxu0 0.0
          %534 = vmatpush1.msra.mxu0 0.0
          %535 = vmatprep.subr.mxu0 0.0
          %536 = vmatpush1.msra.mxu0 0.0
          %537 = vmatprep.subr.mxu0 0.0
          %538 = vmatpush1.msra.mxu0 0.0
          %539 = vmatprep.subr.mxu0 0.0
          %540 = vmatpush1.msra.mxu0 0.0
          %541 = vmatprep.subr.mxu0 0.0
          %542 = vmatpush1.msra.mxu0 0.0
          %543 = vmatprep.subr.mxu0 0.0
          %544 = vmatpush1.msra.mxu0 0.0
          %545 = vmatprep.mubr.f32.mxu0 0.0
          %546 = vmatmul.mubr.f32.gmra.mrb[0].mxu0 %v479
          %v547 = vpop.f32.mrb[0].mxu0
          %v548 = vadd.f32 %v475, %v547
          %v549 = vpop.f32.mrb[0].mxu0
          %550 = vdwg.mxu0
          %v551 = vld [vmem:[%s3] sm:$0x1]
          %v553 = vlaneseq
          %v554 = vshrl.u32 %v553, 7
          %v555 = vsub.s32 0, %v554
          %v556 = vrot.slane %v551, %v555
          %v558 = vmul.f32 %v548, %v556
          %v559 = vld [vmem:[%s4] sm:$0x1]
          %v561 = vlaneseq
          %v562 = vshrl.u32 %v561, 7
          %v563 = vsub.s32 0, %v562
          %v564 = vrot.slane %v559, %v563
          %v566 = vadd.f32 %v558, %v564
          %v567 = vmax.f32 %v566, 0.0
          %v568 = vld [vmem:[%s5] sm:$0xff]
          %v569 = vld [vmem:[%s5 + $0x8] sm:$0xff]
          %v570 = vld [vmem:[%s5 + $0x10] sm:$0xff]
          %v571 = vld [vmem:[%s5 + $0x18] sm:$0xff]
          %v572 = vld [vmem:[%s5 + $0x20] sm:$0xff]
          %v573 = vld [vmem:[%s5 + $0x28] sm:$0xff]
          %v574 = vld [vmem:[%s5 + $0x30] sm:$0xff]
          %v575 = vld [vmem:[%s5 + $0x38] sm:$0xff]
          %v576 = vld [vmem:[%s5 + $0x40] sm:$0xff]
          %v577 = vld [vmem:[%s5 + $0x48] sm:$0xff]
          %v578 = vld [vmem:[%s5 + $0x50] sm:$0xff]
          %v579 = vld [vmem:[%s5 + $0x58] sm:$0xff]
          %v580 = vld [vmem:[%s5 + $0x60] sm:$0xff]
          %v581 = vld [vmem:[%s5 + $0x68] sm:$0xff]
          %v582 = vld [vmem:[%s5 + $0x70] sm:$0xff]
          %v583 = vld [vmem:[%s5 + $0x78] sm:$0xff]
          %v584 = vld [vmem:[%s6] sm:$0x1]
          %v586 = vlaneseq
          %v587 = vshrl.u32 %v586, 7
          %v588 = vsub.s32 0, %v587
          %v589 = vrot.slane %v584, %v588
          %591 = vmatprep.subr.mxu0 0.0
          %592 = vmatpush1.msra.mxu0 %v568
          %593 = vmatprep.subr.mxu0 0.0
          %594 = vmatpush1.msra.mxu0 %v569
          %595 = vmatprep.subr.mxu0 0.0
          %596 = vmatpush1.msra.mxu0 %v570
          %597 = vmatprep.subr.mxu0 0.0
          %598 = vmatpush1.msra.mxu0 %v571
          %599 = vmatprep.subr.mxu0 0.0
          %600 = vmatpush1.msra.mxu0 %v572
          %601 = vmatprep.subr.mxu0 0.0
          %602 = vmatpush1.msra.mxu0 %v573
          %603 = vmatprep.subr.mxu0 0.0
          %604 = vmatpush1.msra.mxu0 %v574
          %605 = vmatprep.subr.mxu0 0.0
          %606 = vmatpush1.msra.mxu0 %v575
          %607 = vmatprep.subr.mxu0 0.0
          %608 = vmatpush1.msra.mxu0 %v576
          %609 = vmatprep.subr.mxu0 0.0
          %610 = vmatpush1.msra.mxu0 %v577
          %611 = vmatprep.subr.mxu0 0.0
          %612 = vmatpush1.msra.mxu0 %v578
          %613 = vmatprep.subr.mxu0 0.0
          %614 = vmatpush1.msra.mxu0 %v579
          %615 = vmatprep.subr.mxu0 0.0
          %616 = vmatpush1.msra.mxu0 %v580
          %617 = vmatprep.subr.mxu0 0.0
          %618 = vmatpush1.msra.mxu0 %v581
          %619 = vmatprep.subr.mxu0 0.0
          %620 = vmatpush1.msra.mxu0 %v582
          %621 = vmatprep.subr.mxu0 0.0
          %622 = vmatpush1.msra.mxu0 %v583
          %623 = vmatprep.subr.mxu0 0.0
          %624 = vmatpush1.msra.mxu0 0.0
          %625 = vmatprep.subr.mxu0 0.0
          %626 = vmatpush1.msra.mxu0 0.0
          %627 = vmatprep.subr.mxu0 0.0
          %628 = vmatpush1.msra.mxu0 0.0
          %629 = vmatprep.subr.mxu0 0.0
          %630 = vmatpush1.msra.mxu0 0.0
          %631 = vmatprep.subr.mxu0 0.0
          %632 = vmatpush1.msra.mxu0 0.0
          %633 = vmatprep.subr.mxu0 0.0
          %634 = vmatpush1.msra.mxu0 0.0
          %635 = vmatprep.subr.mxu0 0.0
          %636 = vmatpush1.msra.mxu0 0.0
          %637 = vmatprep.subr.mxu0 0.0
          %638 = vmatpush1.msra.mxu0 0.0
          %639 = vmatprep.subr.mxu0 0.0
          %640 = vmatpush1.msra.mxu0 0.0
          %641 = vmatprep.subr.mxu0 0.0
          %642 = vmatpush1.msra.mxu0 0.0
          %643 = vmatprep.subr.mxu0 0.0
          %644 = vmatpush1.msra.mxu0 0.0
          %645 = vmatprep.subr.mxu0 0.0
          %646 = vmatpush1.msra.mxu0 0.0
          %647 = vmatprep.subr.mxu0 0.0
          %648 = vmatpush1.msra.mxu0 0.0
          %649 = vmatprep.subr.mxu0 0.0
          %650 = vmatpush1.msra.mxu0 0.0
          %651 = vmatprep.subr.mxu0 0.0
          %652 = vmatpush1.msra.mxu0 0.0
          %653 = vmatprep.subr.mxu0 0.0
          %654 = vmatpush1.msra.mxu0 0.0
          %655 = vmatprep.mubr.f32.mxu0 0.0
          %656 = vmatmul.mubr.f32.gmra.mrb[0].mxu0 %v567
          %v657 = vpop.f32.mrb[0].mxu0
          %v658 = vadd.f32 %v589, %v657
          %v659 = vpop.f32.mrb[0].mxu0
          %660 = vdwg.mxu0
          %v661 = vxor.u32 %v658, 2147483648
          %v662 = vmul.f32 %v661, 1.442695
          %v663 = vpow.pop %v662
          %v664 = vadd.f32 %v663, 1.0
          %v665 = vrcp.pop %v664
          %v666 = vmul.f32 1.0, %v665
          %667 = vst.msk [vmem:[#allocation6] sm:$0xf] %vm460, %v666
        $region60: #{tpu_custom_call.1} parent=47 // pred_fallthru
          _
        // Predicated region
        $region61: #{tpu_custom_call.1} parent=47 // pred_check
          %p668 = pneg %p206
        $region62: #{tpu_custom_call.1} parent=47 // pred_check_branch
          %670 = sbr.rel (%p668) target = $region64
        $region63: #{tpu_custom_call.1} parent=47 // pred_region
          %s672 = ssub.s32 64, 64
          %673 = vsyncadd [#allocation5], %s672
          %s674 = smul.addr %s26, 64
          %s675 = scalar_lea.hbm %s7, %s674
          %s677 = sshll.u32 [#allocation6], 4
          %s678 = int_to_ptr.vmem [resolvable:$true] %s677
          %680 = dma.vmem_to_hbm [thread:$0]  %s678, 64, %s675, [#allocation5]
        $region64: #{tpu_custom_call.1} parent=47 // pred_fallthru
          _
        // Predicated region
        $region65: #{tpu_custom_call.1} parent=47 // pred_check
          %p681 = pneg %p206
        $region66: #{tpu_custom_call.1} parent=47 // pred_check_branch
          %683 = sbr.rel (%p681) target = $region68
        $region67: #{tpu_custom_call.1} parent=47 // pred_region
          %684 = dma.done [#allocation5], 64
        $region68: #{tpu_custom_call.1} parent=47 // pred_fallthru
          _
      $region48: #{tpu_custom_call.1} parent=5 // pred_fallthru
        _
      %p685 = scmp.le.s32.totalorder 2, %s17
      // Predicated region
      $region69: #{tpu_custom_call.1} parent=5 // pred_check
        %p686 = pneg %p685
      $region70: #{tpu_custom_call.1} parent=5 // pred_check_branch
        %688 = sbr.rel (%p686) target = $region72
      $region71: #{tpu_custom_call.1} parent=5 // pred_region
        %s689 = ssub.s32 %s17, 2
      $region72: #{tpu_custom_call.1} parent=5 // pred_fallthru
        _
    $region6: #{tpu_custom_call.1} parent=1 // loop_footer
      %s21 = sadd.s32 1, %s17
    $region7: #{tpu_custom_call.1} parent=1 // loop_footer_branch
      %16 = sbr.rel target = $region3
    $region8: #{tpu_custom_call.1} parent=1 // loop_exit
      _
    %690 = vsyncpa [#allocation4], 1
    %s691 = scalar_lea.sflag [#allocation4], 1
    %692 = vsyncpa %s691, 1
    %693 = vsyncpa [#allocation5], 1
    %s694 = scalar_lea.sflag [#allocation5], 1
    %695 = vsyncpa %s694, 1

</llo_original>
